<compile_context>
chip_gen: v7x
topology: tpu7x:2x2x1
jax: 0.10.0
libtpu: 0.0.40
codegen_flags: <defaults>
</compile_context>

<pallas_src>
import jax
import jax.numpy as jnp
from jax.experimental import pallas as pl
from jax.experimental.pallas import tpu as pltpu


def lm_kernel(ids_ref, ebd_ref, w_ref, b_ref, out_ref):
    # ids_ref: (B_pad, T)        int32   token indices (padded rows are 0)
    # ebd_ref: (T*V, T*E)        bf16    block-diagonal embedding table
    # w_ref  : (T*E, TILE_V)     bf16    vocab tile of lin_w.T (zero-padded)
    # b_ref  : (1, TILE_V)       f32     vocab tile of bias (zero-padded)
    # out_ref: (B_pad, TILE_V)   f32     logits tile
    B, T = ids_ref.shape
    TV, TE = ebd_ref.shape
    V = TV // T

    ids = ids_ref[...]                                          # (B, T)
    iota_c = jax.lax.broadcasted_iota(jnp.int32, (B, TV), 1)    # (B, T*V)

    # Combined one-hot over all token slots: onehot[b, t*V + v] = (ids[b,t]==v).
    # T cheap VPU compares/adds; gid ranges per t are disjoint so sum == OR.
    onehot = jnp.zeros((B, TV), jnp.float32)
    for t in range(T):                                          # T static -> unrolled
        gid_t = ids[:, t:t + 1] + t * V                         # (B, 1)
        onehot = onehot + (gid_t == iota_c).astype(jnp.float32)

    # One full-width MXU pass: (B, T*V) @ (T*V, T*E) -> (B, T*E), f32 acc.
    h = jnp.dot(onehot.astype(jnp.bfloat16), ebd_ref[...],
                preferred_element_type=jnp.float32)             # (B, T*E)
    h = jnp.tanh(h)                                             # f32 on EUP

    # Second full-width MXU pass: (B, T*E) @ (T*E, TILE_V) -> (B, TILE_V).
    logits = jnp.dot(h.astype(jnp.bfloat16), w_ref[...],
                     preferred_element_type=jnp.float32)
    out_ref[...] = logits + b_ref[...]                          # broadcast bias


def language_model_forward(ids, emb_table, lin_w, lin_b,
                           in_tokens, embedding_size, tile_v=128):
    """ids: (B, T) int; emb_table: (V, E); lin_w: (V, T*E) (PyTorch Linear
    layout, y = x @ W.T + b); lin_b: (V,). Returns logits (B, V) float32."""
    B, T = ids.shape
    V, E = emb_table.shape
    assert T == in_tokens and E == embedding_size

    # Pad batch to >=8 sublanes and vocab to a multiple of 128 lanes so the
    # output store is an unmasked, lane-dense vst.
    B_pad = ((max(B, 8) + 7) // 8) * 8
    V_pad = ((V + tile_v - 1) // tile_v) * tile_v

    ids_p = jnp.zeros((B_pad, T), jnp.int32).at[:B].set(ids.astype(jnp.int32))

    # Block-diagonal embedding table (T*V, T*E): Ebd[t*V+v, t*E+e] = emb[v, e].
    ebd = jnp.kron(jnp.eye(T, dtype=jnp.float32),
                   emb_table.astype(jnp.float32)).astype(jnp.bfloat16)

    # lin_w.T padded on the vocab (lane) axis; bias padded to (1, V_pad).
    wt = jnp.zeros((T * E, V_pad), jnp.float32)
    wt = wt.at[:, :V].set(lin_w.T.astype(jnp.float32)).astype(jnp.bfloat16)
    b2 = jnp.zeros((1, V_pad), jnp.float32).at[:, :V].set(lin_b.astype(jnp.float32))

    grid = (V_pad // tile_v,)
    out = pl.pallas_call(
        lm_kernel,
        out_shape=jax.ShapeDtypeStruct((B_pad, V_pad), jnp.float32),
        grid_spec=pltpu.PrefetchScalarGridSpec(
            num_scalar_prefetch=0,
            grid=grid,
            in_specs=[
                pl.BlockSpec((B_pad, T), lambda j: (0, 0)),        # ids (tiny)
                pl.BlockSpec((T * V, T * E), lambda j: (0, 0)),    # block-diag emb
                pl.BlockSpec((T * E, tile_v), lambda j: (0, j)),   # weight tile
                pl.BlockSpec((1, tile_v), lambda j: (0, j)),       # bias tile
            ],
            out_specs=pl.BlockSpec((B_pad, tile_v), lambda j: (0, j)),
        ),
        compiler_params=pltpu.CompilerParams(
            dimension_semantics=("parallel",),         # vocab tiles independent
            vmem_limit_bytes=32 * 1024 * 1024,         # fits v7x's smaller VMEM
        ),
    )(ids_p, ebd, wt, b2)

    return out[:B, :V]


def reference_forward(ids, emb_table, lin_w, lin_b, in_tokens, embedding_size):
    x = jnp.take(emb_table, ids, axis=0)                       # (B, T, E)
    x = x.reshape(ids.shape[0], in_tokens * embedding_size)    # (B, T*E)
    x = jnp.tanh(x)
    return x @ lin_w.T + lin_b                                 # (B, V)


if __name__ == "__main__":
    # Small shapes consistent with the module.
    batch = 4
    in_tokens = 8
    vocab_size = 32
    embedding_size = 16

    key = jax.random.PRNGKey(0)
    k_ids, k_emb, k_w, k_b = jax.random.split(key, 4)

    ids = jax.random.randint(k_ids, (batch, in_tokens), 0, vocab_size, dtype=jnp.int32)
    emb_table = jax.random.normal(k_emb, (vocab_size, embedding_size), dtype=jnp.float32)
    fan_in = in_tokens * embedding_size
    bound = 1.0 / jnp.sqrt(fan_in)
    lin_w = jax.random.uniform(k_w, (vocab_size, fan_in), minval=-bound, maxval=bound,
                               dtype=jnp.float32)
    lin_b = jax.random.uniform(k_b, (vocab_size,), minval=-bound, maxval=bound,
                               dtype=jnp.float32)

    logits = language_model_forward(ids, emb_table, lin_w, lin_b,
                                    in_tokens, embedding_size)
    logits = jax.block_until_ready(logits)

    ref = reference_forward(ids, emb_table, lin_w, lin_b, in_tokens, embedding_size)
    assert logits.shape == (batch, vocab_size)
    # bf16 MXU operands with f32 accumulation -> loosened (but tight for bf16)
    # tolerance vs the pure-f32 reference.
    assert jnp.allclose(logits, ref, atol=2e-2, rtol=2e-2), "mismatch vs reference"

    print("KERNEL_OK")
</pallas_src>

<mosaic_0001>
module attributes {stable_mosaic.version = 11 : i64} {
  func.func @lm_kernel(%arg0: i32, %arg1: memref<8x8xi32, #tpu.memory_space<vmem>>, %arg2: memref<256x128xbf16, #tpu.memory_space<vmem>>, %arg3: memref<128x128xbf16, #tpu.memory_space<vmem>>, %arg4: memref<1x128xf32, #tpu.memory_space<vmem>>, %arg5: memref<8x128xf32, #tpu.memory_space<vmem>>) attributes {dimension_semantics = [#tpu.dimension_semantics<parallel>], iteration_bounds = array<i64: 1>, scalar_prefetch = 0 : i64, scratch_operands = 0 : i64, tpu.core_type = #tpu.core_type<tc>, window_params = [{pipeline_mode = #tpu.pipeline_mode<synchronous>, transform_indices = @transform_0, window_bounds = array<i64: 8, 8>}, {pipeline_mode = #tpu.pipeline_mode<synchronous>, transform_indices = @transform_1, window_bounds = array<i64: 256, 128>}, {transform_indices = @transform_2, window_bounds = array<i64: 128, 128>}, {transform_indices = @transform_3, window_bounds = array<i64: 1, 128>}, {transform_indices = @transform_4, window_bounds = array<i64: 8, 128>}]} {
    %c0 = arith.constant 0 : index
    %c0_0 = arith.constant 0 : index
    %0 = vector.load %arg1[%c0, %c0_0] : memref<8x8xi32, #tpu.memory_space<vmem>>, vector<8x8xi32>
    %1 = tpu.iota {dimensions = array<i32: 1>} : vector<8x256xi32>
    %cst = arith.constant 0.000000e+00 : f32
    %2 = vector.broadcast %cst : f32 to vector<8x256xf32>
    %3 = vector.extract_strided_slice %0 {offsets = [0, 0], sizes = [8, 1], strides = [1, 1]} : vector<8x8xi32> to vector<8x1xi32>
    %c0_i32 = arith.constant 0 : i32
    %4 = vector.broadcast %c0_i32 : i32 to vector<8x1xi32>
    %5 = arith.addi %3, %4 : vector<8x1xi32>
    %6 = vector.broadcast %5 : vector<8x1xi32> to vector<8x256xi32>
    %7 = arith.cmpi eq, %6, %1 : vector<8x256xi32>
    %8 = arith.extui %7 : vector<8x256xi1> to vector<8x256xi32>
    %9 = arith.sitofp %8 : vector<8x256xi32> to vector<8x256xf32>
    %10 = arith.addf %2, %9 : vector<8x256xf32>
    %11 = vector.extract_strided_slice %0 {offsets = [0, 1], sizes = [8, 1], strides = [1, 1]} : vector<8x8xi32> to vector<8x1xi32>
    %c32_i32 = arith.constant 32 : i32
    %12 = vector.broadcast %c32_i32 : i32 to vector<8x1xi32>
    %13 = arith.addi %11, %12 : vector<8x1xi32>
    %14 = vector.broadcast %13 : vector<8x1xi32> to vector<8x256xi32>
    %15 = arith.cmpi eq, %14, %1 : vector<8x256xi32>
    %16 = arith.extui %15 : vector<8x256xi1> to vector<8x256xi32>
    %17 = arith.sitofp %16 : vector<8x256xi32> to vector<8x256xf32>
    %18 = arith.addf %10, %17 : vector<8x256xf32>
    %19 = vector.extract_strided_slice %0 {offsets = [0, 2], sizes = [8, 1], strides = [1, 1]} : vector<8x8xi32> to vector<8x1xi32>
    %c64_i32 = arith.constant 64 : i32
    %20 = vector.broadcast %c64_i32 : i32 to vector<8x1xi32>
    %21 = arith.addi %19, %20 : vector<8x1xi32>
    %22 = vector.broadcast %21 : vector<8x1xi32> to vector<8x256xi32>
    %23 = arith.cmpi eq, %22, %1 : vector<8x256xi32>
    %24 = arith.extui %23 : vector<8x256xi1> to vector<8x256xi32>
    %25 = arith.sitofp %24 : vector<8x256xi32> to vector<8x256xf32>
    %26 = arith.addf %18, %25 : vector<8x256xf32>
    %27 = vector.extract_strided_slice %0 {offsets = [0, 3], sizes = [8, 1], strides = [1, 1]} : vector<8x8xi32> to vector<8x1xi32>
    %c96_i32 = arith.constant 96 : i32
    %28 = vector.broadcast %c96_i32 : i32 to vector<8x1xi32>
    %29 = arith.addi %27, %28 : vector<8x1xi32>
    %30 = vector.broadcast %29 : vector<8x1xi32> to vector<8x256xi32>
    %31 = arith.cmpi eq, %30, %1 : vector<8x256xi32>
    %32 = arith.extui %31 : vector<8x256xi1> to vector<8x256xi32>
    %33 = arith.sitofp %32 : vector<8x256xi32> to vector<8x256xf32>
    %34 = arith.addf %26, %33 : vector<8x256xf32>
    %35 = vector.extract_strided_slice %0 {offsets = [0, 4], sizes = [8, 1], strides = [1, 1]} : vector<8x8xi32> to vector<8x1xi32>
    %c128_i32 = arith.constant 128 : i32
    %36 = vector.broadcast %c128_i32 : i32 to vector<8x1xi32>
    %37 = arith.addi %35, %36 : vector<8x1xi32>
    %38 = vector.broadcast %37 : vector<8x1xi32> to vector<8x256xi32>
    %39 = arith.cmpi eq, %38, %1 : vector<8x256xi32>
    %40 = arith.extui %39 : vector<8x256xi1> to vector<8x256xi32>
    %41 = arith.sitofp %40 : vector<8x256xi32> to vector<8x256xf32>
    %42 = arith.addf %34, %41 : vector<8x256xf32>
    %43 = vector.extract_strided_slice %0 {offsets = [0, 5], sizes = [8, 1], strides = [1, 1]} : vector<8x8xi32> to vector<8x1xi32>
    %c160_i32 = arith.constant 160 : i32
    %44 = vector.broadcast %c160_i32 : i32 to vector<8x1xi32>
    %45 = arith.addi %43, %44 : vector<8x1xi32>
    %46 = vector.broadcast %45 : vector<8x1xi32> to vector<8x256xi32>
    %47 = arith.cmpi eq, %46, %1 : vector<8x256xi32>
    %48 = arith.extui %47 : vector<8x256xi1> to vector<8x256xi32>
    %49 = arith.sitofp %48 : vector<8x256xi32> to vector<8x256xf32>
    %50 = arith.addf %42, %49 : vector<8x256xf32>
    %51 = vector.extract_strided_slice %0 {offsets = [0, 6], sizes = [8, 1], strides = [1, 1]} : vector<8x8xi32> to vector<8x1xi32>
    %c192_i32 = arith.constant 192 : i32
    %52 = vector.broadcast %c192_i32 : i32 to vector<8x1xi32>
    %53 = arith.addi %51, %52 : vector<8x1xi32>
    %54 = vector.broadcast %53 : vector<8x1xi32> to vector<8x256xi32>
    %55 = arith.cmpi eq, %54, %1 : vector<8x256xi32>
    %56 = arith.extui %55 : vector<8x256xi1> to vector<8x256xi32>
    %57 = arith.sitofp %56 : vector<8x256xi32> to vector<8x256xf32>
    %58 = arith.addf %50, %57 : vector<8x256xf32>
    %59 = vector.extract_strided_slice %0 {offsets = [0, 7], sizes = [8, 1], strides = [1, 1]} : vector<8x8xi32> to vector<8x1xi32>
    %c224_i32 = arith.constant 224 : i32
    %60 = vector.broadcast %c224_i32 : i32 to vector<8x1xi32>
    %61 = arith.addi %59, %60 : vector<8x1xi32>
    %62 = vector.broadcast %61 : vector<8x1xi32> to vector<8x256xi32>
    %63 = arith.cmpi eq, %62, %1 : vector<8x256xi32>
    %64 = arith.extui %63 : vector<8x256xi1> to vector<8x256xi32>
    %65 = arith.sitofp %64 : vector<8x256xi32> to vector<8x256xf32>
    %66 = arith.addf %58, %65 : vector<8x256xf32>
    %67 = arith.truncf %66 : vector<8x256xf32> to vector<8x256xbf16>
    %c0_1 = arith.constant 0 : index
    %c0_2 = arith.constant 0 : index
    %68 = vector.load %arg2[%c0_1, %c0_2] : memref<256x128xbf16, #tpu.memory_space<vmem>>, vector<256x128xbf16>
    %cst_3 = arith.constant dense<0.000000e+00> : vector<8x128xf32>
    %69 = tpu.matmul %67, %68, %cst_3 {dimension_numbers = #tpu.dot_dimension_numbers<[1], [0], [0], [1], [0, 0, 1, 1], [], []>} : vector<8x256xbf16>, vector<256x128xbf16>, vector<8x128xf32> -> vector<8x128xf32>
    %70 = math.tanh %69 : vector<8x128xf32>
    %71 = arith.truncf %70 : vector<8x128xf32> to vector<8x128xbf16>
    %c0_4 = arith.constant 0 : index
    %c0_5 = arith.constant 0 : index
    %72 = vector.load %arg3[%c0_4, %c0_5] : memref<128x128xbf16, #tpu.memory_space<vmem>>, vector<128x128xbf16>
    %cst_6 = arith.constant dense<0.000000e+00> : vector<8x128xf32>
    %73 = tpu.matmul %71, %72, %cst_6 {dimension_numbers = #tpu.dot_dimension_numbers<[1], [0], [0], [1], [0, 0, 1, 1], [], []>} : vector<8x128xbf16>, vector<128x128xbf16>, vector<8x128xf32> -> vector<8x128xf32>
    %c0_7 = arith.constant 0 : index
    %c0_8 = arith.constant 0 : index
    %74 = vector.load %arg4[%c0_7, %c0_8] : memref<1x128xf32, #tpu.memory_space<vmem>>, vector<1x128xf32>
    %75 = vector.broadcast %74 : vector<1x128xf32> to vector<8x128xf32>
    %76 = arith.addf %73, %75 : vector<8x128xf32>
    %c0_9 = arith.constant 0 : index
    %c0_10 = arith.constant 0 : index
    %77 = vector.load %arg5[%c0_9, %c0_10] : memref<8x128xf32, #tpu.memory_space<vmem>>, vector<8x128xf32>
    tpu.vector_store %arg5[%c0_9, %c0_10], %76 {strides = array<i32>} : memref<8x128xf32, #tpu.memory_space<vmem>>, vector<8x128xf32>,
    return
  }
  func.func @transform_0(%arg0: i32) -> (i32, i32) {
    %c0_i32 = arith.constant 0 : i32
    %c0_i32_0 = arith.constant 0 : i32
    %c0_i32_1 = arith.constant 0 : i32
    return %c0_i32, %c0_i32_0 : i32, i32
  }
  func.func @transform_1(%arg0: i32) -> (i32, i32) {
    %c0_i32 = arith.constant 0 : i32
    %c0_i32_0 = arith.constant 0 : i32
    %c0_i32_1 = arith.constant 0 : i32
    return %c0_i32, %c0_i32_0 : i32, i32
  }
  func.func @transform_2(%arg0: i32) -> (i32, i32) {
    %c0_i32 = arith.constant 0 : i32
    %c0_i32_0 = arith.constant 0 : i32
    return %c0_i32, %arg0 : i32, i32
  }
  func.func @transform_3(%arg0: i32) -> (i32, i32) {
    %c0_i32 = arith.constant 0 : i32
    %c0_i32_0 = arith.constant 0 : i32
    return %c0_i32, %arg0 : i32, i32
  }
  func.func @transform_4(%arg0: i32) -> (i32, i32) {
    %c0_i32 = arith.constant 0 : i32
    %c0_i32_0 = arith.constant 0 : i32
    return %c0_i32, %arg0 : i32, i32
  }
}

</mosaic_0001>

<llo_original>
// kernel: tpu_custom_call.1
$region0: #{tpu_custom_call.1}
  #allocation0 [shape = 'u32[]', space=smem, size = 0x4, offset = 0x4, fixed_abs, tag = 'smem constant byte address 0x4 - core index']
  #allocation1 [shape = 'u32[144,128]{1,0:T(1,128)}', space=vmem, size = 0x12000, scoped, tag = 'internal scratch']
  %s0 = inlined_call_operand.hbm [shape: s32[8,8], index: 0, kind: input, shape index: {}]
  %s1 = inlined_call_operand.hbm [shape: bf16[256,128], index: 1, kind: input, shape index: {}]
  %s2 = inlined_call_operand.hbm [shape: bf16[128,128], index: 2, kind: input, shape index: {}]
  %s3 = inlined_call_operand.vmem [shape: f32[1,128], index: 3, kind: input, shape index: {}]
  %s4 = inlined_call_operand.hbm [shape: f32[8,128], index: 4, kind: output, shape index: {}]
  %s5 = sld [smem:[#allocation0]]
  $region38: #{tpu_custom_call.1} parent=0
    _
  %s7 = ssub.s32 1, %s5
  %s8 = scalar_select 0, %s7, %s5
  $region1: #{tpu_custom_call.1} parent=0
    #allocation2 [shape = 'u8[4096]{0}', space=vmem, size = 0x1000, scoped, tag = 'input window, operand 0, single buffered']
    #allocation3 [shape = 's32[1]{0}', space=sflag, size = 0x4, scoped, tag = 'scoped memory for tpu_custom_call.1']
    #allocation4 [shape = 's32[1]{0}', space=sflag, size = 0x4, scoped, tag = 'scoped memory for tpu_custom_call.1']
    #allocation5 [shape = 'u8[65536]{0}', space=vmem, size = 0x10000, scoped, tag = 'input window, operand 1, single buffered']
    #allocation6 [shape = 's32[1]{0}', space=sflag, size = 0x4, scoped, tag = 'scoped memory for tpu_custom_call.1']
    #allocation7 [shape = 'u8[32768]{0}', space=vmem, size = 0x8000, scoped, tag = 'input window, operand 2, single buffered']
    #allocation8 [shape = 'u8[4096]{0}', space=vmem, size = 0x1000, scoped, tag = 'output window, operand 0, single buffered']
    %9 = vsyncpa [#allocation3], 0
    %10 = vsyncpa [#allocation6], 0
    %11 = vsyncpa [#allocation4], 0
    // Predicated region
    $region2: #{tpu_custom_call.1} parent=1 // pred_check
      _
    $region3: #{tpu_custom_call.1} parent=1 // pred_check_branch
      %13 = sbr.rel (0) target = $region5
    $region4: #{tpu_custom_call.1} parent=1 // pred_region
      %s15 = ssub.s32 128, 128
      %16 = vsyncadd [#allocation3], %s15
      %s18 = sshll.u32 [#allocation2], 4
      %s19 = int_to_ptr.vmem [resolvable:$true] %s18
      %21 = dma.hbm_to_vmem [thread:$0]  %s0, 128, %s19, [#allocation3]
    $region5: #{tpu_custom_call.1} parent=1 // pred_fallthru
      _
    // Predicated region
    $region6: #{tpu_custom_call.1} parent=1 // pred_check
      _
    $region7: #{tpu_custom_call.1} parent=1 // pred_check_branch
      %23 = sbr.rel (0) target = $region9
    $region8: #{tpu_custom_call.1} parent=1 // pred_region
      %s25 = ssub.s32 2048, 2048
      %26 = vsyncadd [#allocation6], %s25
      %s27 = sshll.u32 [#allocation5], 4
      %s28 = int_to_ptr.vmem [resolvable:$true] %s27
      %33 = dma.hbm_to_vmem [thread:$0]  %s1, 2048, %s28, [#allocation6], 64, 64, 4
    $region9: #{tpu_custom_call.1} parent=1 // pred_fallthru
      _
    // Predicated region
    $region10: #{tpu_custom_call.1} parent=1 // pred_check
      _
    $region11: #{tpu_custom_call.1} parent=1 // pred_check_branch
      %35 = sbr.rel (0) target = $region13
    $region12: #{tpu_custom_call.1} parent=1 // pred_region
      %s37 = ssub.s32 1024, 1024
      %38 = vsyncadd [#allocation6], %s37
      %s39 = sshll.u32 [#allocation7], 4
      %s40 = int_to_ptr.vmem [resolvable:$true] %s39
      %45 = dma.hbm_to_vmem [thread:$0]  %s2, 1024, %s40, [#allocation6], 64, 64, 4
    $region13: #{tpu_custom_call.1} parent=1 // pred_fallthru
      _
    // Predicated region
    $region14: #{tpu_custom_call.1} parent=1 // pred_check
      _
    $region15: #{tpu_custom_call.1} parent=1 // pred_check_branch
      %47 = sbr.rel (0) target = $region17
    $region16: #{tpu_custom_call.1} parent=1 // pred_region
      _
    $region17: #{tpu_custom_call.1} parent=1 // pred_fallthru
      _
    // Predicated region
    $region18: #{tpu_custom_call.1} parent=1 // pred_check
      _
    $region19: #{tpu_custom_call.1} parent=1 // pred_check_branch
      %49 = sbr.rel (0) target = $region21
    $region20: #{tpu_custom_call.1} parent=1 // pred_region
      %50 = dma.done [#allocation3], 128
    $region21: #{tpu_custom_call.1} parent=1 // pred_fallthru
      _
    // Predicated region
    $region22: #{tpu_custom_call.1} parent=1 // pred_check
      _
    $region23: #{tpu_custom_call.1} parent=1 // pred_check_branch
      %52 = sbr.rel (0) target = $region25
    $region24: #{tpu_custom_call.1} parent=1 // pred_region
      %53 = dma.done [#allocation6], 2048
    $region25: #{tpu_custom_call.1} parent=1 // pred_fallthru
      _
    // Predicated region
    $region26: #{tpu_custom_call.1} parent=1 // pred_check
      _
    $region27: #{tpu_custom_call.1} parent=1 // pred_check_branch
      %55 = sbr.rel (0) target = $region29
    $region28: #{tpu_custom_call.1} parent=1 // pred_region
      %56 = dma.done [#allocation6], 1024
    $region29: #{tpu_custom_call.1} parent=1 // pred_fallthru
      _
    %v58 = vld [vmem:[#allocation2] sm:$0xff]
    %v59 = vlaneseq
    %v60 = vand.u32 %v59, 127
    %v61 = vadd.s32 %v60, 128
    %62 = vset.pattern.permute.xlu0 0
    %63 = vperm.xlu0 %62, %v58
    %v64 = vpop.permute.xlu0 %63
    %vm65 = vcmp.eq.s32.totalorder %v64, %v60
    %vm66 = vcmp.eq.s32.totalorder %v64, %v61
    %v67 = vsel %vm65, 1, 0
    %v68 = vsel %vm66, 1, 0
    %v69 = vcvt.s32.f32 %v67
    %v70 = vcvt.s32.f32 %v68
    %v71 = vadd.f32 %v69, 0.0
    %v72 = vadd.f32 %v70, 0.0
    %v73 = vadd.s32 %v58, 32
    %74 = vset.pattern.permute.xlu0 1
    %75 = vperm.xlu0 %74, %v73
    %v76 = vpop.permute.xlu0 %75
    %vm77 = vcmp.eq.s32.totalorder %v76, %v60
    %vm78 = vcmp.eq.s32.totalorder %v76, %v61
    %v79 = vsel %vm77, 1, 0
    %v80 = vsel %vm78, 1, 0
    %v81 = vcvt.s32.f32 %v79
    %v82 = vcvt.s32.f32 %v80
    %v83 = vadd.f32 %v71, %v81
    %v84 = vadd.f32 %v72, %v82
    %v85 = vadd.s32 %v58, 64
    %86 = vset.pattern.permute.xlu0 2
    %87 = vperm.xlu0 %86, %v85
    %v88 = vpop.permute.xlu0 %87
    %vm89 = vcmp.eq.s32.totalorder %v88, %v60
    %vm90 = vcmp.eq.s32.totalorder %v88, %v61
    %v91 = vsel %vm89, 1, 0
    %v92 = vsel %vm90, 1, 0
    %v93 = vcvt.s32.f32 %v91
    %v94 = vcvt.s32.f32 %v92
    %v95 = vadd.f32 %v83, %v93
    %v96 = vadd.f32 %v84, %v94
    %v97 = vadd.s32 %v58, 96
    %98 = vset.pattern.permute.xlu0 3
    %99 = vperm.xlu0 %98, %v97
    %v100 = vpop.permute.xlu0 %99
    %vm101 = vcmp.eq.s32.totalorder %v100, %v60
    %vm102 = vcmp.eq.s32.totalorder %v100, %v61
    %v103 = vsel %vm101, 1, 0
    %v104 = vsel %vm102, 1, 0
    %v105 = vcvt.s32.f32 %v103
    %v106 = vcvt.s32.f32 %v104
    %v107 = vadd.f32 %v95, %v105
    %v108 = vadd.f32 %v96, %v106
    %v109 = vadd.s32 %v58, 128
    %110 = vset.pattern.permute.xlu0 4
    %111 = vperm.xlu0 %110, %v109
    %v112 = vpop.permute.xlu0 %111
    %vm113 = vcmp.eq.s32.totalorder %v112, %v60
    %vm114 = vcmp.eq.s32.totalorder %v112, %v61
    %v115 = vsel %vm113, 1, 0
    %v116 = vsel %vm114, 1, 0
    %v117 = vcvt.s32.f32 %v115
    %v118 = vcvt.s32.f32 %v116
    %v119 = vadd.f32 %v107, %v117
    %v120 = vadd.f32 %v108, %v118
    %v121 = vadd.s32 %v58, 160
    %122 = vset.pattern.permute.xlu0 5
    %123 = vperm.xlu0 %122, %v121
    %v124 = vpop.permute.xlu0 %123
    %vm125 = vcmp.eq.s32.totalorder %v124, %v60
    %vm126 = vcmp.eq.s32.totalorder %v124, %v61
    %v127 = vsel %vm125, 1, 0
    %v128 = vsel %vm126, 1, 0
    %v129 = vcvt.s32.f32 %v127
    %v130 = vcvt.s32.f32 %v128
    %v131 = vadd.f32 %v119, %v129
    %v132 = vadd.f32 %v120, %v130
    %v133 = vadd.s32 %v58, 192
    %134 = vset.pattern.permute.xlu0 6
    %135 = vperm.xlu0 %134, %v133
    %v136 = vpop.permute.xlu0 %135
    %vm137 = vcmp.eq.s32.totalorder %v136, %v60
    %vm138 = vcmp.eq.s32.totalorder %v136, %v61
    %v139 = vsel %vm137, 1, 0
    %v140 = vsel %vm138, 1, 0
    %v141 = vcvt.s32.f32 %v139
    %v142 = vcvt.s32.f32 %v140
    %v143 = vadd.f32 %v131, %v141
    %v144 = vadd.f32 %v132, %v142
    %v145 = vadd.s32 %v58, 224
    %146 = vset.pattern.permute.xlu0 7
    %147 = vperm.xlu0 %146, %v145
    %v148 = vpop.permute.xlu0 %147
    %vm149 = vcmp.eq.s32.totalorder %v148, %v60
    %vm150 = vcmp.eq.s32.totalorder %v148, %v61
    %v151 = vsel %vm149, 1, 0
    %v152 = vsel %vm150, 1, 0
    %v153 = vcvt.s32.f32 %v151
    %v154 = vcvt.s32.f32 %v152
    %v155 = vadd.f32 %v143, %v153
    %v156 = vadd.f32 %v144, %v154
    %v157 = vpack.c.bf16 %v155, %v155
    %v158 = vpack.c.bf16 %v156, %v156
    %v159 = vld [vmem:[#allocation5] sm:$0xf]
    %v160 = vld [vmem:[#allocation5 + $0x4] sm:$0xf]
    %v161 = vld [vmem:[#allocation5 + $0x8] sm:$0xf]
    %v162 = vld [vmem:[#allocation5 + $0xc] sm:$0xf]
    %v163 = vld [vmem:[#allocation5 + $0x10] sm:$0xf]
    %v164 = vld [vmem:[#allocation5 + $0x14] sm:$0xf]
    %v165 = vld [vmem:[#allocation5 + $0x18] sm:$0xf]
    %v166 = vld [vmem:[#allocation5 + $0x1c] sm:$0xf]
    %v167 = vld [vmem:[#allocation5 + $0x20] sm:$0xf]
    %v168 = vld [vmem:[#allocation5 + $0x24] sm:$0xf]
    %v169 = vld [vmem:[#allocation5 + $0x28] sm:$0xf]
    %v170 = vld [vmem:[#allocation5 + $0x2c] sm:$0xf]
    %v171 = vld [vmem:[#allocation5 + $0x30] sm:$0xf]
    %v172 = vld [vmem:[#allocation5 + $0x34] sm:$0xf]
    %v173 = vld [vmem:[#allocation5 + $0x38] sm:$0xf]
    %v174 = vld [vmem:[#allocation5 + $0x3c] sm:$0xf]
    %v175 = vld [vmem:[#allocation5 + $0x40] sm:$0xf]
    %v176 = vld [vmem:[#allocation5 + $0x44] sm:$0xf]
    %v177 = vld [vmem:[#allocation5 + $0x48] sm:$0xf]
    %v178 = vld [vmem:[#allocation5 + $0x4c] sm:$0xf]
    %v179 = vld [vmem:[#allocation5 + $0x50] sm:$0xf]
    %v180 = vld [vmem:[#allocation5 + $0x54] sm:$0xf]
    %v181 = vld [vmem:[#allocation5 + $0x58] sm:$0xf]
    %v182 = vld [vmem:[#allocation5 + $0x5c] sm:$0xf]
    %v183 = vld [vmem:[#allocation5 + $0x60] sm:$0xf]
    %v184 = vld [vmem:[#allocation5 + $0x64] sm:$0xf]
    %v185 = vld [vmem:[#allocation5 + $0x68] sm:$0xf]
    %v186 = vld [vmem:[#allocation5 + $0x6c] sm:$0xf]
    %v187 = vld [vmem:[#allocation5 + $0x70] sm:$0xf]
    %v188 = vld [vmem:[#allocation5 + $0x74] sm:$0xf]
    %v189 = vld [vmem:[#allocation5 + $0x78] sm:$0xf]
    %v190 = vld [vmem:[#allocation5 + $0x7c] sm:$0xf]
    %v223 = vunpack.c.l.b16 %v159
    %v224 = vunpack.c.l.b16 %v160
    %v225 = vunpack.c.l.b16 %v161
    %v226 = vunpack.c.l.b16 %v162
    %v227 = vunpack.c.l.b16 %v163
    %v228 = vunpack.c.l.b16 %v164
    %v229 = vunpack.c.l.b16 %v165
    %v230 = vunpack.c.l.b16 %v166
    %v231 = vunpack.c.l.b16 %v167
    %v232 = vunpack.c.l.b16 %v168
    %v233 = vunpack.c.l.b16 %v169
    %v234 = vunpack.c.l.b16 %v170
    %v235 = vunpack.c.l.b16 %v171
    %v236 = vunpack.c.l.b16 %v172
    %v237 = vunpack.c.l.b16 %v173
    %v238 = vunpack.c.l.b16 %v174
    %v239 = vunpack.c.l.b16 %v175
    %v240 = vunpack.c.l.b16 %v176
    %v241 = vunpack.c.l.b16 %v177
    %v242 = vunpack.c.l.b16 %v178
    %v243 = vunpack.c.l.b16 %v179
    %v244 = vunpack.c.l.b16 %v180
    %v245 = vunpack.c.l.b16 %v181
    %v246 = vunpack.c.l.b16 %v182
    %v247 = vunpack.c.l.b16 %v183
    %v248 = vunpack.c.l.b16 %v184
    %v249 = vunpack.c.l.b16 %v185
    %v250 = vunpack.c.l.b16 %v186
    %v251 = vunpack.c.l.b16 %v187
    %v252 = vunpack.c.l.b16 %v188
    %v253 = vunpack.c.l.b16 %v189
    %v254 = vunpack.c.l.b16 %v190
    %v255 = vpack.c.b16 %v224, %v223
    %v256 = vpack.c.b16 %v226, %v225
    %v257 = vpack.c.b16 %v228, %v227
    %v258 = vpack.c.b16 %v230, %v229
    %v259 = vpack.c.b16 %v232, %v231
    %v260 = vpack.c.b16 %v234, %v233
    %v261 = vpack.c.b16 %v236, %v235
    %v262 = vpack.c.b16 %v238, %v237
    %v263 = vpack.c.b16 %v240, %v239
    %v264 = vpack.c.b16 %v242, %v241
    %v265 = vpack.c.b16 %v244, %v243
    %v266 = vpack.c.b16 %v246, %v245
    %v267 = vpack.c.b16 %v248, %v247
    %v268 = vpack.c.b16 %v250, %v249
    %v269 = vpack.c.b16 %v252, %v251
    %v270 = vpack.c.b16 %v254, %v253
    %287 = vmatprep.subr.bf16.mxu0 0
    %288 = vmatpush1.bf16.msra.mxu0 %v255
    %289 = vmatprep.subr.bf16.mxu0 0
    %290 = vmatpush1.bf16.msra.mxu0 %v256
    %291 = vmatprep.subr.bf16.mxu0 0
    %292 = vmatpush1.bf16.msra.mxu0 %v257
    %293 = vmatprep.subr.bf16.mxu0 0
    %294 = vmatpush1.bf16.msra.mxu0 %v258
    %295 = vmatprep.subr.bf16.mxu0 0
    %296 = vmatpush1.bf16.msra.mxu0 %v259
    %297 = vmatprep.subr.bf16.mxu0 0
    %298 = vmatpush1.bf16.msra.mxu0 %v260
    %299 = vmatprep.subr.bf16.mxu0 0
    %300 = vmatpush1.bf16.msra.mxu0 %v261
    %301 = vmatprep.subr.bf16.mxu0 0
    %302 = vmatpush1.bf16.msra.mxu0 %v262
    %303 = vmatprep.subr.bf16.mxu0 0
    %304 = vmatpush1.bf16.msra.mxu0 %v263
    %305 = vmatprep.subr.bf16.mxu0 0
    %306 = vmatpush1.bf16.msra.mxu0 %v264
    %307 = vmatprep.subr.bf16.mxu0 0
    %308 = vmatpush1.bf16.msra.mxu0 %v265
    %309 = vmatprep.subr.bf16.mxu0 0
    %310 = vmatpush1.bf16.msra.mxu0 %v266
    %311 = vmatprep.subr.bf16.mxu0 0
    %312 = vmatpush1.bf16.msra.mxu0 %v267
    %313 = vmatprep.subr.bf16.mxu0 0
    %314 = vmatpush1.bf16.msra.mxu0 %v268
    %315 = vmatprep.subr.bf16.mxu0 0
    %316 = vmatpush1.bf16.msra.mxu0 %v269
    %317 = vmatprep.subr.bf16.mxu0 0
    %318 = vmatpush1.bf16.msra.mxu0 %v270
    %319 = vmatprep.mubr.bf16.mxu0 %v158
    %320 = vmatmul.mubr.bf16.gmra.mrb[0].mxu0 %v157
    %v321 = vpop.f32.mrb[0].mxu0
    %v322 = vadd.f32 0.0, %v321
    %v323 = vpop.f32.mrb[0].mxu0
    %v324 = vpop.f32.mrb[0].mxu0
    %v325 = vpop.f32.mrb[0].mxu0
    %326 = vdwg.mxu0
    %v327 = vtanh.pop %v322
    %v328 = vpack.c.bf16 %v327, %v327
    %v329 = vld [vmem:[#allocation7] sm:$0xf]
    %v330 = vld [vmem:[#allocation7 + $0x4] sm:$0xf]
    %v331 = vld [vmem:[#allocation7 + $0x8] sm:$0xf]
    %v332 = vld [vmem:[#allocation7 + $0xc] sm:$0xf]
    %v333 = vld [vmem:[#allocation7 + $0x10] sm:$0xf]
    %v334 = vld [vmem:[#allocation7 + $0x14] sm:$0xf]
    %v335 = vld [vmem:[#allocation7 + $0x18] sm:$0xf]
    %v336 = vld [vmem:[#allocation7 + $0x1c] sm:$0xf]
    %v337 = vld [vmem:[#allocation7 + $0x20] sm:$0xf]
    %v338 = vld [vmem:[#allocation7 + $0x24] sm:$0xf]
    %v339 = vld [vmem:[#allocation7 + $0x28] sm:$0xf]
    %v340 = vld [vmem:[#allocation7 + $0x2c] sm:$0xf]
    %v341 = vld [vmem:[#allocation7 + $0x30] sm:$0xf]
    %v342 = vld [vmem:[#allocation7 + $0x34] sm:$0xf]
    %v343 = vld [vmem:[#allocation7 + $0x38] sm:$0xf]
    %v344 = vld [vmem:[#allocation7 + $0x3c] sm:$0xf]
    %v345 = vld [vmem:[%s3] sm:$0x1]
    %v347 = vlaneseq
    %v348 = vshrl.u32 %v347, 7
    %v349 = vsub.s32 0, %v348
    %v350 = vrot.slane %v345, %v349
    %v368 = vunpack.c.l.b16 %v329
    %v369 = vunpack.c.l.b16 %v330
    %v370 = vunpack.c.l.b16 %v331
    %v371 = vunpack.c.l.b16 %v332
    %v372 = vunpack.c.l.b16 %v333
    %v373 = vunpack.c.l.b16 %v334
    %v374 = vunpack.c.l.b16 %v335
    %v375 = vunpack.c.l.b16 %v336
    %v376 = vunpack.c.l.b16 %v337
    %v377 = vunpack.c.l.b16 %v338
    %v378 = vunpack.c.l.b16 %v339
    %v379 = vunpack.c.l.b16 %v340
    %v380 = vunpack.c.l.b16 %v341
    %v381 = vunpack.c.l.b16 %v342
    %v382 = vunpack.c.l.b16 %v343
    %v383 = vunpack.c.l.b16 %v344
    %v384 = vpack.c.b16 %v369, %v368
    %v385 = vpack.c.b16 %v371, %v370
    %v386 = vpack.c.b16 %v373, %v372
    %v387 = vpack.c.b16 %v375, %v374
    %v388 = vpack.c.b16 %v377, %v376
    %v389 = vpack.c.b16 %v379, %v378
    %v390 = vpack.c.b16 %v381, %v380
    %v391 = vpack.c.b16 %v383, %v382
    %400 = vmatprep.subr.bf16.mxu0 0
    %401 = vmatpush1.bf16.msra.mxu0 %v384
    %402 = vmatprep.subr.bf16.mxu0 0
    %403 = vmatpush1.bf16.msra.mxu0 %v385
    %404 = vmatprep.subr.bf16.mxu0 0
    %405 = vmatpush1.bf16.msra.mxu0 %v386
    %406 = vmatprep.subr.bf16.mxu0 0
    %407 = vmatpush1.bf16.msra.mxu0 %v387
    %408 = vmatprep.subr.bf16.mxu0 0
    %409 = vmatpush1.bf16.msra.mxu0 %v388
    %410 = vmatprep.subr.bf16.mxu0 0
    %411 = vmatpush1.bf16.msra.mxu0 %v389
    %412 = vmatprep.subr.bf16.mxu0 0
    %413 = vmatpush1.bf16.msra.mxu0 %v390
    %414 = vmatprep.subr.bf16.mxu0 0
    %415 = vmatpush1.bf16.msra.mxu0 %v391
    %416 = vmatprep.subr.bf16.mxu0 0
    %417 = vmatpush1.bf16.msra.mxu0 0
    %418 = vmatprep.subr.bf16.mxu0 0
    %419 = vmatpush1.bf16.msra.mxu0 0
    %420 = vmatprep.subr.bf16.mxu0 0
    %421 = vmatpush1.bf16.msra.mxu0 0
    %422 = vmatprep.subr.bf16.mxu0 0
    %423 = vmatpush1.bf16.msra.mxu0 0
    %424 = vmatprep.subr.bf16.mxu0 0
    %425 = vmatpush1.bf16.msra.mxu0 0
    %426 = vmatprep.subr.bf16.mxu0 0
    %427 = vmatpush1.bf16.msra.mxu0 0
    %428 = vmatprep.subr.bf16.mxu0 0
    %429 = vmatpush1.bf16.msra.mxu0 0
    %430 = vmatprep.subr.bf16.mxu0 0
    %431 = vmatpush1.bf16.msra.mxu0 0
    %432 = vmatprep.mubr.bf16.mxu0 0
    %433 = vmatmul.mubr.bf16.gmra.mrb[0].mxu0 %v328
    %v434 = vpop.f32.mrb[0].mxu0
    %v435 = vadd.f32 %v350, %v434
    %v436 = vpop.f32.mrb[0].mxu0
    %v437 = vpop.f32.mrb[0].mxu0
    %v438 = vpop.f32.mrb[0].mxu0
    %439 = vdwg.mxu0
    %440 = vst [vmem:[#allocation8] sm:$0xff] %v435
    // Predicated region
    $region30: #{tpu_custom_call.1} parent=1 // pred_check
      _
    $region31: #{tpu_custom_call.1} parent=1 // pred_check_branch
      %442 = sbr.rel (0) target = $region33
    $region32: #{tpu_custom_call.1} parent=1 // pred_region
      %s444 = ssub.s32 128, 128
      %445 = vsyncadd [#allocation4], %s444
      %s447 = sshll.u32 [#allocation8], 4
      %s448 = int_to_ptr.vmem [resolvable:$true] %s447
      %450 = dma.vmem_to_hbm [thread:$0]  %s448, 128, %s4, [#allocation4]
    $region33: #{tpu_custom_call.1} parent=1 // pred_fallthru
      _
    // Predicated region
    $region34: #{tpu_custom_call.1} parent=1 // pred_check
      _
    $region35: #{tpu_custom_call.1} parent=1 // pred_check_branch
      %452 = sbr.rel (0) target = $region37
    $region36: #{tpu_custom_call.1} parent=1 // pred_region
      %453 = dma.done [#allocation4], 128
    $region37: #{tpu_custom_call.1} parent=1 // pred_fallthru
      _
    %454 = vsyncpa [#allocation3], 1
    %455 = vsyncpa [#allocation6], 1
    %456 = vsyncpa [#allocation4], 1

</llo_original>
